<compile_context>
chip_gen: v7x
topology: tpu7x:2x2x1
jax: 0.10.0
libtpu: 0.0.40
codegen_flags: <defaults>
</compile_context>

<pallas_src>
import math

import jax
import jax.numpy as jnp
from jax import lax
from jax.experimental import pallas as pl
from jax.experimental.pallas import tpu as pltpu


def _make_arcmargin_kernel(s, m, easy_margin, class_tile):
    cos_m = math.cos(m)
    sin_m = math.sin(m)
    th = math.cos(math.pi - m)
    mm = math.sin(math.pi - m) * m

    def kernel(x_ref, wt_ref, inv_x_ref, inv_w_ref, label_ref, out_ref):
        c = pl.program_id(0)

        # Raw MXU-dtype tiles straight into the MXU; f32 accumulation.
        raw = jnp.dot(x_ref[...], wt_ref[...],
                      preferred_element_type=jnp.float32)            # (B, TC)

        # Norms were computed once in the wrapper from the f32 operands.
        cosine = raw * inv_x_ref[...] * inv_w_ref[...]                # (B, TC)

        sine = jnp.sqrt(jnp.clip(1.0 - cosine * cosine, 0.0, 1.0))
        phi = cosine * cos_m - sine * sin_m
        if easy_margin:
            phi = jnp.where(cosine > 0.0, phi, cosine)
        else:
            phi = jnp.where(cosine > th, phi, cosine - mm)

        # One-hot via tile-local iota compare + single select (no blend math).
        label_local = label_ref[...] - c * class_tile                 # (B, 1)
        col_ids = lax.broadcasted_iota(jnp.int32, cosine.shape, 1)    # (B, TC)
        out = jnp.where(col_ids == label_local, phi, cosine) * s
        out_ref[...] = out.astype(out_ref.dtype)

    return kernel


def _vmem_budget_bytes():
    """Generation-aware VMEM budget for tile selection / vmem_limit_bytes."""
    cap = None
    try:
        cap = int(pltpu.get_tpu_info().vmem_capacity_bytes)
    except Exception:
        cap = None
    if cap is None:
        cap = 128 * 1024 * 1024
    if cap <= 64 * 1024 * 1024:
        # v7x-class: 64 MiB physical per TensorCore, leave compiler headroom.
        return 40 * 1024 * 1024
    # v5e / v6e: 128 MiB physical; push well past the 32 MiB scoped default.
    return 80 * 1024 * 1024


def _choose_class_tile(B, D, C, w_bytes, x_bytes, vmem_budget):
    """Largest multiple-of-128 class tile whose double-buffered streamed tiles
    (weight column block, inv_w block, output block) plus the resident x /
    inv_x / label blocks fit the VMEM budget.  Also caps the tile so the grid
    has at least two steps (keeps both v7x TensorCores busy; costs only one
    extra ~0.35us grid step on single-TC chips)."""
    if C <= 128:
        return C  # single block equal to the full (possibly <128) class dim

    c_pad = ((C + 127) // 128) * 128
    # Per class-column cost (double-buffered streamed operands + output).
    per_col = 2 * (D * w_bytes) + 2 * (B * 4) + 2 * 4
    # Resident blocks (Pallas still double-buffers them) + slack.
    fixed = 2 * (B * D * x_bytes) + 4 * (B * 4) + 2 * (B * 4) + (1 << 20)
    tc_max = max(128, ((vmem_budget - fixed) // per_col) // 128 * 128)

    # Guarantee >= 2 grid steps so the "parallel" class axis spans both
    # TensorCores on v7x.
    two_way = max(128, (((C + 1) // 2 + 127) // 128) * 128)

    return int(min(tc_max, two_way, c_pad))


def arc_margin_product(x, weight, label, *, s=30.0, m=0.5, easy_margin=False,
                       mxu_dtype=jnp.bfloat16, class_tile=None, weight_t=None):
    """x: (B, in_features); weight: (out_features, in_features); label: (B,).
    Returns (B, out_features) f32.

    `mxu_dtype` controls only the MXU operand stream (accumulation and all
    elementwise / norm math stay f32).  Pass `weight_t` of shape
    (in_features, out_features) already in `mxu_dtype` to skip the wrapper-side
    transpose+cast HBM pass (recommended: own that layout per weight update)."""
    B, D = x.shape
    C, D2 = weight.shape
    assert D == D2

    x32 = x.astype(jnp.float32)
    w32 = weight.astype(jnp.float32)

    # Hoisted L2 norms, computed once from the f32 operands (F.normalize uses
    # x / max(||x||, eps)  ==  x * rsqrt(max(sum_sq, eps^2))).
    eps_sq = jnp.float32((1e-12) ** 2)
    inv_x = lax.rsqrt(jnp.maximum(
        jnp.sum(x32 * x32, axis=1, keepdims=True), eps_sq))          # (B, 1) f32
    inv_w = lax.rsqrt(jnp.maximum(
        jnp.sum(w32 * w32, axis=1, keepdims=True), eps_sq)).reshape(1, C)  # (1, C)

    # MXU operand stream: x resident in mxu_dtype, weight in (D, C) mxu_dtype.
    x_mxu = x32.astype(mxu_dtype)
    if weight_t is None:
        # One-time transpose+cast (fuses into a single XLA pass over weight).
        weight_t = w32.T.astype(mxu_dtype)
    else:
        assert weight_t.shape == (D, C)
        weight_t = weight_t.astype(mxu_dtype)

    label2d = label.astype(jnp.int32).reshape(B, 1)

    w_bytes = jnp.dtype(mxu_dtype).itemsize
    x_bytes = w_bytes
    budget = _vmem_budget_bytes()
    tc = class_tile if class_tile is not None else _choose_class_tile(
        B, D, C, w_bytes, x_bytes, budget)
    grid = (pl.cdiv(C, tc),)

    # VMEM: double-buffered streamed tiles + resident blocks + headroom.
    est = (2 * D * tc * w_bytes + 2 * tc * 4 + 2 * B * tc * 4
           + 2 * B * D * x_bytes + 4 * B * 4 + 2 * B * 4 + (2 << 20))
    vmem_limit = int(min(max(est, 16 * 1024 * 1024), budget))

    kernel = _make_arcmargin_kernel(s, m, easy_margin, tc)

    return pl.pallas_call(
        kernel,
        out_shape=jax.ShapeDtypeStruct((B, C), jnp.float32),
        grid=grid,
        in_specs=[
            pl.BlockSpec((B, D), lambda c: (0, 0)),    # x: resident, mxu dtype
            pl.BlockSpec((D, tc), lambda c: (0, c)),   # weight: streamed per tile
            pl.BlockSpec((B, 1), lambda c: (0, 0)),    # inv_x: resident f32
            pl.BlockSpec((1, tc), lambda c: (0, c)),   # inv_w: streamed f32
            pl.BlockSpec((B, 1), lambda c: (0, 0)),    # labels: resident int32
        ],
        out_specs=pl.BlockSpec((B, tc), lambda c: (0, c)),
        compiler_params=pltpu.CompilerParams(
            dimension_semantics=("parallel",),          # class tiles independent
            vmem_limit_bytes=vmem_limit),
    )(x_mxu, weight_t, inv_x, inv_w, label2d)


def _reference(x, weight, label, *, s=30.0, m=0.5, easy_margin=False):
    """Pure-JAX reference mirroring the PyTorch forward."""
    eps = 1e-12
    xn = x / jnp.maximum(jnp.linalg.norm(x, axis=1, keepdims=True), eps)
    wn = weight / jnp.maximum(jnp.linalg.norm(weight, axis=1, keepdims=True), eps)
    cosine = xn @ wn.T
    sine = jnp.sqrt(jnp.clip(1.0 - cosine ** 2, 0.0, 1.0))
    cos_m, sin_m = math.cos(m), math.sin(m)
    th, mm = math.cos(math.pi - m), math.sin(math.pi - m) * m
    phi = cosine * cos_m - sine * sin_m
    if easy_margin:
        phi = jnp.where(cosine > 0.0, phi, cosine)
    else:
        phi = jnp.where(cosine > th, phi, cosine - mm)
    one_hot = jax.nn.one_hot(label, cosine.shape[1], dtype=jnp.float32)
    return (one_hot * phi + (1.0 - one_hot) * cosine) * s


if __name__ == "__main__":
    # Small shapes consistent with the module: batch=8, in_features=32, classes=256.
    B, IN_FEATURES, OUT_FEATURES = 8, 32, 256

    key = jax.random.PRNGKey(0)
    kx, kw, kl = jax.random.split(key, 3)

    x = jax.random.normal(kx, (B, IN_FEATURES), dtype=jnp.float32)

    # Deterministic Xavier-uniform init for weight (out_features, in_features).
    bound = math.sqrt(6.0 / (IN_FEATURES + OUT_FEATURES))
    weight = jax.random.uniform(
        kw, (OUT_FEATURES, IN_FEATURES), dtype=jnp.float32,
        minval=-bound, maxval=bound)

    label = jax.random.randint(kl, (B,), 0, OUT_FEATURES, dtype=jnp.int32)

    ref = _reference(x, weight, label, s=30.0, m=0.5, easy_margin=False)

    # f32 MXU stream, auto tile (chooser splits into >=2 class tiles).
    out_f32 = jax.block_until_ready(
        arc_margin_product(x, weight, label, s=30.0, m=0.5, easy_margin=False,
                           mxu_dtype=jnp.float32))
    assert out_f32.shape == (B, OUT_FEATURES)
    assert jnp.allclose(out_f32, ref, atol=1e-4, rtol=1e-4), "mismatch (f32, auto tile)"

    # Single full-width class tile (exercises the single-step path).
    out_single = jax.block_until_ready(
        arc_margin_product(x, weight, label, s=30.0, m=0.5, easy_margin=False,
                           mxu_dtype=jnp.float32, class_tile=OUT_FEATURES))
    assert jnp.allclose(out_single, ref, atol=1e-4, rtol=1e-4), "mismatch (f32, single tile)"

    # Explicit 128-wide class tiles (streamed grid + tile-local label offset).
    out_tiled = jax.block_until_ready(
        arc_margin_product(x, weight, label, s=30.0, m=0.5, easy_margin=False,
                           mxu_dtype=jnp.float32, class_tile=128))
    assert jnp.allclose(out_tiled, ref, atol=1e-4, rtol=1e-4), "mismatch (f32, tiled)"

    # Default bf16 MXU operand stream (f32 accumulate, f32 norms / elementwise).
    out_bf16 = jax.block_until_ready(
        arc_margin_product(x, weight, label, s=30.0, m=0.5, easy_margin=False))
    assert jnp.allclose(out_bf16, ref, atol=5e-1, rtol=5e-2), "mismatch (bf16 stream)"

    # Pre-transposed weight path (caller owns the (D, C) mxu-dtype layout).
    w_t = weight.T.astype(jnp.bfloat16)
    out_pret = jax.block_until_ready(
        arc_margin_product(x, weight, label, s=30.0, m=0.5, easy_margin=False,
                           weight_t=w_t))
    assert jnp.allclose(out_pret, ref, atol=5e-1, rtol=5e-2), "mismatch (weight_t)"

    print("KERNEL_OK")
</pallas_src>

<mosaic_0001>
module attributes {stable_mosaic.version = 11 : i64} {
  func.func @kernel(%arg0: i32, %arg1: memref<8x32xf32, #tpu.memory_space<vmem>>, %arg2: memref<32x128xf32, #tpu.memory_space<vmem>>, %arg3: memref<8x1xf32, #tpu.memory_space<vmem>>, %arg4: memref<1x128xf32, #tpu.memory_space<vmem>>, %arg5: memref<8x1xi32, #tpu.memory_space<vmem>>, %arg6: memref<8x128xf32, #tpu.memory_space<vmem>>) attributes {dimension_semantics = [#tpu.dimension_semantics<parallel>], iteration_bounds = array<i64: 2>, scalar_prefetch = 0 : i64, scratch_operands = 0 : i64, tpu.core_type = #tpu.core_type<tc>, window_params = [{pipeline_mode = #tpu.pipeline_mode<synchronous>, transform_indices = @transform_0, window_bounds = array<i64: 8, 32>}, {transform_indices = @transform_1, window_bounds = array<i64: 32, 128>}, {pipeline_mode = #tpu.pipeline_mode<synchronous>, transform_indices = @transform_2, window_bounds = array<i64: 8, 1>}, {transform_indices = @transform_3, window_bounds = array<i64: 1, 128>}, {pipeline_mode = #tpu.pipeline_mode<synchronous>, transform_indices = @transform_4, window_bounds = array<i64: 8, 1>}, {transform_indices = @transform_5, window_bounds = array<i64: 8, 128>}]} {
    %c0 = arith.constant 0 : index
    %c0_0 = arith.constant 0 : index
    %0 = vector.load %arg1[%c0, %c0_0] : memref<8x32xf32, #tpu.memory_space<vmem>>, vector<8x32xf32>
    %c0_1 = arith.constant 0 : index
    %c0_2 = arith.constant 0 : index
    %1 = vector.load %arg2[%c0_1, %c0_2] : memref<32x128xf32, #tpu.memory_space<vmem>>, vector<32x128xf32>
    %cst = arith.constant dense<0.000000e+00> : vector<8x128xf32>
    %2 = tpu.matmul %0, %1, %cst {dimension_numbers = #tpu.dot_dimension_numbers<[1], [0], [0], [1], [0, 0, 1, 1], [], []>} : vector<8x32xf32>, vector<32x128xf32>, vector<8x128xf32> -> vector<8x128xf32>
    %c0_3 = arith.constant 0 : index
    %c0_4 = arith.constant 0 : index
    %3 = vector.load %arg3[%c0_3, %c0_4] : memref<8x1xf32, #tpu.memory_space<vmem>>, vector<8x1xf32>
    %4 = vector.broadcast %3 : vector<8x1xf32> to vector<8x128xf32>
    %5 = arith.mulf %2, %4 : vector<8x128xf32>
    %c0_5 = arith.constant 0 : index
    %c0_6 = arith.constant 0 : index
    %6 = vector.load %arg4[%c0_5, %c0_6] : memref<1x128xf32, #tpu.memory_space<vmem>>, vector<1x128xf32>
    %7 = vector.broadcast %6 : vector<1x128xf32> to vector<8x128xf32>
    %8 = arith.mulf %5, %7 : vector<8x128xf32>
    %9 = arith.mulf %8, %8 : vector<8x128xf32>
    %cst_7 = arith.constant 1.000000e+00 : f32
    %10 = vector.broadcast %cst_7 : f32 to vector<8x128xf32>
    %11 = arith.subf %10, %9 : vector<8x128xf32>
    %cst_8 = arith.constant 0.000000e+00 : f32
    %cst_9 = arith.constant 1.000000e+00 : f32
    %12 = vector.broadcast %cst_8 : f32 to vector<8x128xf32>
    %13 = arith.maximumf %12, %11 : vector<8x128xf32>
    %14 = vector.broadcast %cst_9 : f32 to vector<8x128xf32>
    %15 = arith.minimumf %14, %13 : vector<8x128xf32>
    %16 = math.sqrt %15 : vector<8x128xf32>
    %cst_10 = arith.constant 0.87758255 : f32
    %17 = vector.broadcast %cst_10 : f32 to vector<8x128xf32>
    %18 = arith.mulf %8, %17 : vector<8x128xf32>
    %cst_11 = arith.constant 0.47942555 : f32
    %19 = vector.broadcast %cst_11 : f32 to vector<8x128xf32>
    %20 = arith.mulf %16, %19 : vector<8x128xf32>
    %21 = arith.subf %18, %20 : vector<8x128xf32>
    %cst_12 = arith.constant -0.87758255 : f32
    %22 = vector.broadcast %cst_12 : f32 to vector<8x128xf32>
    %23 = arith.cmpf ogt, %8, %22 : vector<8x128xf32>
    %cst_13 = arith.constant 0.239712775 : f32
    %24 = vector.broadcast %cst_13 : f32 to vector<8x128xf32>
    %25 = arith.subf %8, %24 : vector<8x128xf32>
    %26 = arith.select %23, %21, %25 : vector<8x128xi1>, vector<8x128xf32>
    %c0_14 = arith.constant 0 : index
    %c0_15 = arith.constant 0 : index
    %27 = vector.load %arg5[%c0_14, %c0_15] : memref<8x1xi32, #tpu.memory_space<vmem>>, vector<8x1xi32>
    %c128_i32 = arith.constant 128 : i32
    %28 = arith.muli %arg0, %c128_i32 : i32
    %29 = vector.broadcast %28 : i32 to vector<8x1xi32>
    %30 = arith.subi %27, %29 : vector<8x1xi32>
    %31 = tpu.iota {dimensions = array<i32: 1>} : vector<8x128xi32>
    %32 = vector.broadcast %30 : vector<8x1xi32> to vector<8x128xi32>
    %33 = arith.cmpi eq, %31, %32 : vector<8x128xi32>
    %34 = arith.select %33, %26, %8 : vector<8x128xi1>, vector<8x128xf32>
    %cst_16 = arith.constant 3.000000e+01 : f32
    %35 = vector.broadcast %cst_16 : f32 to vector<8x128xf32>
    %36 = arith.mulf %34, %35 : vector<8x128xf32>
    %c0_17 = arith.constant 0 : index
    %c0_18 = arith.constant 0 : index
    %37 = vector.load %arg6[%c0_17, %c0_18] : memref<8x128xf32, #tpu.memory_space<vmem>>, vector<8x128xf32>
    tpu.vector_store %arg6[%c0_17, %c0_18], %36 {strides = array<i32>} : memref<8x128xf32, #tpu.memory_space<vmem>>, vector<8x128xf32>,
    return
  }
  func.func @transform_0(%arg0: i32) -> (i32, i32) {
    %c0_i32 = arith.constant 0 : i32
    %c0_i32_0 = arith.constant 0 : i32
    %c0_i32_1 = arith.constant 0 : i32
    return %c0_i32, %c0_i32_0 : i32, i32
  }
  func.func @transform_1(%arg0: i32) -> (i32, i32) {
    %c0_i32 = arith.constant 0 : i32
    %c0_i32_0 = arith.constant 0 : i32
    return %c0_i32, %arg0 : i32, i32
  }
  func.func @transform_2(%arg0: i32) -> (i32, i32) {
    %c0_i32 = arith.constant 0 : i32
    %c0_i32_0 = arith.constant 0 : i32
    %c0_i32_1 = arith.constant 0 : i32
    return %c0_i32, %c0_i32_0 : i32, i32
  }
  func.func @transform_3(%arg0: i32) -> (i32, i32) {
    %c0_i32 = arith.constant 0 : i32
    %c0_i32_0 = arith.constant 0 : i32
    return %c0_i32, %arg0 : i32, i32
  }
  func.func @transform_4(%arg0: i32) -> (i32, i32) {
    %c0_i32 = arith.constant 0 : i32
    %c0_i32_0 = arith.constant 0 : i32
    %c0_i32_1 = arith.constant 0 : i32
    return %c0_i32, %c0_i32_0 : i32, i32
  }
  func.func @transform_5(%arg0: i32) -> (i32, i32) {
    %c0_i32 = arith.constant 0 : i32
    %c0_i32_0 = arith.constant 0 : i32
    return %c0_i32, %arg0 : i32, i32
  }
}

</mosaic_0001>

<llo_original>
// kernel: tpu_custom_call.1
$region0: #{tpu_custom_call.1}
  #allocation0 [shape = 'u32[]', space=smem, size = 0x4, offset = 0x4, fixed_abs, tag = 'smem constant byte address 0x4 - core index']
  #allocation1 [shape = 'u32[144,128]{1,0:T(1,128)}', space=vmem, size = 0x12000, scoped, tag = 'internal scratch']
  %s0 = inlined_call_operand.vmem [shape: f32[8,32], index: 0, kind: input, shape index: {}]
  %s1 = inlined_call_operand.hbm [shape: f32[32,256], index: 1, kind: input, shape index: {}]
  %s2 = inlined_call_operand.vmem [shape: f32[8,1], index: 2, kind: input, shape index: {}]
  %s3 = inlined_call_operand.vmem [shape: f32[1,256], index: 3, kind: input, shape index: {}]
  %s4 = inlined_call_operand.vmem [shape: s32[8,1], index: 4, kind: input, shape index: {}]
  %s5 = inlined_call_operand.hbm [shape: f32[8,256], index: 5, kind: output, shape index: {}]
  %s6 = sld [smem:[#allocation0]]
  $region57: #{tpu_custom_call.1} parent=0
    _
  %s8 = ssub.s32 1, %s6
  %s9 = scalar_select 0, %s8, %s6
  $region1: #{tpu_custom_call.1} parent=0
    #allocation2 [shape = 'u8[32768]{0}', space=vmem, size = 0x8000, scoped, tag = 'input window, operand 1']
    #allocation3 [shape = 's32[2]{0}', space=sflag, size = 0x8, scoped, tag = 'scoped memory for tpu_custom_call.1']
    #allocation4 [shape = 's32[2]{0}', space=sflag, size = 0x8, scoped, tag = 'scoped memory for tpu_custom_call.1']
    #allocation5 [shape = 'u8[8192]{0}', space=vmem, size = 0x2000, scoped, tag = 'output window, operand 0']
    %10 = vsyncpa [#allocation3], 0
    %s11 = scalar_lea.sflag [#allocation3], 1
    %12 = vsyncpa %s11, 0
    %13 = vsyncpa [#allocation4], 0
    %s14 = scalar_lea.sflag [#allocation4], 1
    %15 = vsyncpa %s14, 0
    loop: start=0, step=1, limit=4
    $region2: #{tpu_custom_call.1} parent=1 // loop_pre_header
      _
    $region3: #{tpu_custom_call.1} parent=1 // loop_header
      %s17 = sphi 0, %s21
      %p18 = scmp.ge.s32.totalorder %s17, 4
      %s25 = sphi 0, %s25
      %s27 = sphi 0, %s25
      %s28 = sphi 0, %s27
      %s42 = sphi 0, %s28
      %s48 = sphi 0, %s50
      %s51 = sphi 0, %s48
      %s52 = sphi 0, %s51
      %s68 = sphi 0, %s52
      %s72 = sphi 0, %s72
      %s74 = sphi 0, %s72
      %s75 = sphi 0, %s74
      %s89 = sphi 0, %s75
      %s95 = sphi 0, %s97
      %s98 = sphi 0, %s95
      %s99 = sphi 0, %s98
      %s115 = sphi 0, %s99
      %s119 = sphi 0, %s119
      %s121 = sphi 0, %s119
      %s122 = sphi 0, %s121
      %s136 = sphi 0, %s122
      %s142 = sphi 0, %s144
      %s145 = sphi 0, %s142
      %s146 = sphi 0, %s145
      %s162 = sphi 0, %s146
    $region4: #{tpu_custom_call.1} parent=1 // loop_header_branch
      %20 = sbr.rel (%p18) target = $region8
    $region5: #{tpu_custom_call.1} parent=1 // loop_body
      %s22 = ssub.s32 %s17, 1
      %s23 = ssub.s32 %s17, 2
      %s24 = sadd.s32 %s17, 1
      %s26 = sadd.s32 %s25, 1
      %p29 = scmp.eq.s32.totalorder %s17, 1
      %p30 = scmp.ne.s32.totalorder %s25, %s27
      %p31 = scmp.eq.s32.totalorder %s17, 0
      %p32 = por %p30, %p31
      %p33 = scmp.ne.s32.totalorder %s25, %s27
      %p34 = scmp.eq.s32.totalorder %s22, 1
      %p35 = por %p33, %p34
      %p36 = scmp.ne.s32.totalorder %s27, %s28
      %p37 = scmp.eq.s32.totalorder %s22, 0
      %p38 = por %p36, %p37
      %p39 = scmp.ne.s32.totalorder %s27, %s28
      %p40 = scmp.eq.s32.totalorder %s23, 1
      %p41 = por %p39, %p40
      %p43 = scmp.ne.s32.totalorder %s28, %s42
      %p44 = scmp.eq.s32.totalorder %s23, 0
      %p45 = por %p43, %p44
      %s46 = ssub.s32 %s17, %s24
      %p47 = scmp.eq.s32.totalorder %s46, 0
      %s49 = sadd.s32 %s48, 1
      %s50 = scalar_select %p47, %s48, %s49
      %p53 = pneg %p47
      %p54 = scmp.eq.s32.totalorder %s17, 1
      %p55 = por %p53, %p54
      %p56 = scmp.ne.s32.totalorder %s48, %s51
      %p57 = scmp.eq.s32.totalorder %s17, 0
      %p58 = por %p56, %p57
      %p59 = scmp.ne.s32.totalorder %s48, %s51
      %p60 = scmp.eq.s32.totalorder %s22, 1
      %p61 = por %p59, %p60
      %p62 = scmp.ne.s32.totalorder %s51, %s52
      %p63 = scmp.eq.s32.totalorder %s22, 0
      %p64 = por %p62, %p63
      %p65 = scmp.ne.s32.totalorder %s51, %s52
      %p66 = scmp.eq.s32.totalorder %s23, 1
      %p67 = por %p65, %p66
      %p69 = scmp.ne.s32.totalorder %s52, %s68
      %p70 = scmp.eq.s32.totalorder %s23, 0
      %p71 = por %p69, %p70
      %s73 = sadd.s32 %s72, 1
      %p76 = scmp.eq.s32.totalorder %s17, 1
      %p77 = scmp.ne.s32.totalorder %s72, %s74
      %p78 = scmp.eq.s32.totalorder %s17, 0
      %p79 = por %p77, %p78
      %p80 = scmp.ne.s32.totalorder %s72, %s74
      %p81 = scmp.eq.s32.totalorder %s22, 1
      %p82 = por %p80, %p81
      %p83 = scmp.ne.s32.totalorder %s74, %s75
      %p84 = scmp.eq.s32.totalorder %s22, 0
      %p85 = por %p83, %p84
      %p86 = scmp.ne.s32.totalorder %s74, %s75
      %p87 = scmp.eq.s32.totalorder %s23, 1
      %p88 = por %p86, %p87
      %p90 = scmp.ne.s32.totalorder %s75, %s89
      %p91 = scmp.eq.s32.totalorder %s23, 0
      %p92 = por %p90, %p91
      %s93 = ssub.s32 %s17, %s24
      %p94 = scmp.eq.s32.totalorder %s93, 0
      %s96 = sadd.s32 %s95, 1
      %s97 = scalar_select %p94, %s95, %s96
      %p100 = pneg %p94
      %p101 = scmp.eq.s32.totalorder %s17, 1
      %p102 = por %p100, %p101
      %p103 = scmp.ne.s32.totalorder %s95, %s98
      %p104 = scmp.eq.s32.totalorder %s17, 0
      %p105 = por %p103, %p104
      %p106 = scmp.ne.s32.totalorder %s95, %s98
      %p107 = scmp.eq.s32.totalorder %s22, 1
      %p108 = por %p106, %p107
      %p109 = scmp.ne.s32.totalorder %s98, %s99
      %p110 = scmp.eq.s32.totalorder %s22, 0
      %p111 = por %p109, %p110
      %p112 = scmp.ne.s32.totalorder %s98, %s99
      %p113 = scmp.eq.s32.totalorder %s23, 1
      %p114 = por %p112, %p113
      %p116 = scmp.ne.s32.totalorder %s99, %s115
      %p117 = scmp.eq.s32.totalorder %s23, 0
      %p118 = por %p116, %p117
      %s120 = sadd.s32 %s119, 1
      %p123 = scmp.eq.s32.totalorder %s17, 1
      %p124 = scmp.ne.s32.totalorder %s119, %s121
      %p125 = scmp.eq.s32.totalorder %s17, 0
      %p126 = por %p124, %p125
      %p127 = scmp.ne.s32.totalorder %s119, %s121
      %p128 = scmp.eq.s32.totalorder %s22, 1
      %p129 = por %p127, %p128
      %p130 = scmp.ne.s32.totalorder %s121, %s122
      %p131 = scmp.eq.s32.totalorder %s22, 0
      %p132 = por %p130, %p131
      %p133 = scmp.ne.s32.totalorder %s121, %s122
      %p134 = scmp.eq.s32.totalorder %s23, 1
      %p135 = por %p133, %p134
      %p137 = scmp.ne.s32.totalorder %s122, %s136
      %p138 = scmp.eq.s32.totalorder %s23, 0
      %p139 = por %p137, %p138
      %s140 = ssub.s32 %s17, %s24
      %p141 = scmp.eq.s32.totalorder %s140, 0
      %s143 = sadd.s32 %s142, 1
      %s144 = scalar_select %p141, %s142, %s143
      %p147 = pneg %p141
      %p148 = scmp.eq.s32.totalorder %s17, 1
      %p149 = por %p147, %p148
      %p150 = scmp.ne.s32.totalorder %s142, %s145
      %p151 = scmp.eq.s32.totalorder %s17, 0
      %p152 = por %p150, %p151
      %p153 = scmp.ne.s32.totalorder %s142, %s145
      %p154 = scmp.eq.s32.totalorder %s22, 1
      %p155 = por %p153, %p154
      %p156 = scmp.ne.s32.totalorder %s145, %s146
      %p157 = scmp.eq.s32.totalorder %s22, 0
      %p158 = por %p156, %p157
      %p159 = scmp.ne.s32.totalorder %s145, %s146
      %p160 = scmp.eq.s32.totalorder %s23, 1
      %p161 = por %p159, %p160
      %p163 = scmp.ne.s32.totalorder %s146, %s162
      %p164 = scmp.eq.s32.totalorder %s23, 0
      %p165 = por %p163, %p164
      %p166 = scmp.le.s32.totalorder 1, %s17
      %p167 = scmp.lt.s32.totalorder %s17, 3
      %p168 = pnand %p166, %p167
      %p169 = pneg %p168
      // Predicated region
      $region9: #{tpu_custom_call.1} parent=5 // pred_check
        _
      $region10: #{tpu_custom_call.1} parent=5 // pred_check_branch
        %171 = sbr.rel (%p168) target = $region12
      $region11: #{tpu_custom_call.1} parent=5 // pred_region
        %s172 = ssub.s32 %s17, 1
        // Predicated region
        $region13: #{tpu_custom_call.1} parent=11 // pred_check
          %p173 = pneg %p38
        $region14: #{tpu_custom_call.1} parent=11 // pred_check_branch
          %175 = sbr.rel (%p173) target = $region16
        $region15: #{tpu_custom_call.1} parent=11 // pred_region
          _
        $region16: #{tpu_custom_call.1} parent=11 // pred_fallthru
          _
        // Predicated region
        $region17: #{tpu_custom_call.1} parent=11 // pred_check
          %p176 = pneg %p85
        $region18: #{tpu_custom_call.1} parent=11 // pred_check_branch
          %178 = sbr.rel (%p176) target = $region20
        $region19: #{tpu_custom_call.1} parent=11 // pred_region
          _
        $region20: #{tpu_custom_call.1} parent=11 // pred_fallthru
          _
        // Predicated region
        $region21: #{tpu_custom_call.1} parent=11 // pred_check
          %p179 = pneg %p132
        $region22: #{tpu_custom_call.1} parent=11 // pred_check_branch
          %181 = sbr.rel (%p179) target = $region24
        $region23: #{tpu_custom_call.1} parent=11 // pred_region
          _
        $region24: #{tpu_custom_call.1} parent=11 // pred_fallthru
          _
      $region12: #{tpu_custom_call.1} parent=5 // pred_fallthru
        _
      %p182 = scmp.lt.s32.totalorder %s17, 2
      // Predicated region
      $region25: #{tpu_custom_call.1} parent=5 // pred_check
        %p183 = pneg %p182
      $region26: #{tpu_custom_call.1} parent=5 // pred_check_branch
        %185 = sbr.rel (%p183) target = $region28
      $region27: #{tpu_custom_call.1} parent=5 // pred_region
        // Predicated region
        $region29: #{tpu_custom_call.1} parent=27 // pred_check
          %p186 = pneg %p58
        $region30: #{tpu_custom_call.1} parent=27 // pred_check_branch
          %188 = sbr.rel (%p186) target = $region32
        $region31: #{tpu_custom_call.1} parent=27 // pred_region
          %s189 = sand.u32 %s48, 1
          %s190 = scalar_lea.sflag [#allocation3], %s189
          %s191 = sand.u32 %s48, 1
          %s192 = smul.addr %s191, 32
          %s193 = scalar_lea.vmem [#allocation2], %s192
          %s195 = ssub.s32 512, 512
          %196 = vsyncadd %s190, %s195
          %s197 = smul.addr %s17, 128
          %s198 = scalar_lea.hbm %s1, %s197
          %s199 = sshll.u32 %s193, 4
          %s200 = int_to_ptr.vmem [resolvable:$true] %s199
          %205 = dma.hbm_to_vmem [thread:$0]  %s198, 512, %s200, %s190, 256, 128, 8
        $region32: #{tpu_custom_call.1} parent=27 // pred_fallthru
          _
        // Predicated region
        $region33: #{tpu_custom_call.1} parent=27 // pred_check
          %p206 = pneg %p105
        $region34: #{tpu_custom_call.1} parent=27 // pred_check_branch
          %208 = sbr.rel (%p206) target = $region36
        $region35: #{tpu_custom_call.1} parent=27 // pred_region
          %p209 = scmp.lt.s32.totalorder %s17, 1
          %s210 = scalar_select %p209, %s17, 1
          %s211 = scalar_lea.vmem %s3, %s210
        $region36: #{tpu_custom_call.1} parent=27 // pred_fallthru
          _
      $region28: #{tpu_custom_call.1} parent=5 // pred_fallthru
        _
      %p212 = scmp.le.s32.totalorder 1, %s17
      %p213 = scmp.lt.s32.totalorder %s17, 3
      %p214 = pnand %p212, %p213
      %p215 = pneg %p214
      // Predicated region
      $region37: #{tpu_custom_call.1} parent=5 // pred_check
        _
      $region38: #{tpu_custom_call.1} parent=5 // pred_check_branch
        %217 = sbr.rel (%p214) target = $region40
      $region39: #{tpu_custom_call.1} parent=5 // pred_region
        %s218 = ssub.s32 %s17, 1
        %s219 = sand.u32 %s51, 1
        %s220 = scalar_lea.sflag [#allocation3], %s219
        %s221 = sand.u32 %s51, 1
        %s222 = smul.addr %s221, 32
        %s223 = scalar_lea.vmem [#allocation2], %s222
        // Predicated region
        $region41: #{tpu_custom_call.1} parent=39 // pred_check
          %p224 = pneg %p64
        $region42: #{tpu_custom_call.1} parent=39 // pred_check_branch
          %226 = sbr.rel (%p224) target = $region44
        $region43: #{tpu_custom_call.1} parent=39 // pred_region
          %227 = dma.done %s220, 512
        $region44: #{tpu_custom_call.1} parent=39 // pred_fallthru
          _
        %p228 = pneg %p38
        %p229 = pneg %p35
        %s230 = sand.u32 %s51, 1
        %s231 = scalar_lea.sflag [#allocation3], %s230
        %s232 = sand.u32 %s51, 1
        %s233 = smul.addr %s232, 32
        %s234 = scalar_lea.vmem [#allocation2], %s233
        %p235 = pneg %p64
        %p236 = pneg %p61
        %p237 = pneg %p85
        %p238 = pneg %p82
        %p239 = scmp.lt.s32.totalorder %s22, 1
        %s240 = scalar_select %p239, %s22, 1
        %s241 = scalar_lea.vmem %s3, %s240
        %p242 = pneg %p111
        %p243 = pneg %p108
        %p244 = pneg %p132
        %p245 = pneg %p129
        %p246 = pneg %p158
        %p247 = pneg %p155
        %s248 = sand.u32 %s145, 1
        %s249 = scalar_lea.sflag [#allocation4], %s248
        %s250 = sand.u32 %s145, 1
        %s251 = smul.addr %s250, 8
        %s252 = scalar_lea.vmem [#allocation5], %s251
        %p253 = scmp.lt.s32.totalorder %s22, 1
        %s254 = scalar_select %p253, %s22, 1
        %s255 = scalar_lea.vmem %s3, %s254
        %v256 = vld [vmem:[%s0] sm:$0xff]
        %v257 = vld [vmem:[%s223] sm:$0xff]
        %v258 = vld [vmem:[%s223 + $0x8] sm:$0xff]
        %v259 = vld [vmem:[%s223 + $0x10] sm:$0xff]
        %v260 = vld [vmem:[%s223 + $0x18] sm:$0xff]
        %vm261 = vcmask 261120
        %v263 = vsel %vm261, %v256, 0
        %265 = vmatprep.subr.mxu0 0.0
        %266 = vmatpush1.msra.mxu0 %v257
        %267 = vmatprep.subr.mxu0 0.0
        %268 = vmatpush1.msra.mxu0 %v258
        %269 = vmatprep.subr.mxu0 0.0
        %270 = vmatpush1.msra.mxu0 %v259
        %271 = vmatprep.subr.mxu0 0.0
        %272 = vmatpush1.msra.mxu0 %v260
        %273 = vmatprep.subr.mxu0 0.0
        %274 = vmatpush1.msra.mxu0 0.0
        %275 = vmatprep.subr.mxu0 0.0
        %276 = vmatpush1.msra.mxu0 0.0
        %277 = vmatprep.subr.mxu0 0.0
        %278 = vmatpush1.msra.mxu0 0.0
        %279 = vmatprep.subr.mxu0 0.0
        %280 = vmatpush1.msra.mxu0 0.0
        %281 = vmatprep.subr.mxu0 0.0
        %282 = vmatpush1.msra.mxu0 0.0
        %283 = vmatprep.subr.mxu0 0.0
        %284 = vmatpush1.msra.mxu0 0.0
        %285 = vmatprep.subr.mxu0 0.0
        %286 = vmatpush1.msra.mxu0 0.0
        %287 = vmatprep.subr.mxu0 0.0
        %288 = vmatpush1.msra.mxu0 0.0
        %289 = vmatprep.subr.mxu0 0.0
        %290 = vmatpush1.msra.mxu0 0.0
        %291 = vmatprep.subr.mxu0 0.0
        %292 = vmatpush1.msra.mxu0 0.0
        %293 = vmatprep.subr.mxu0 0.0
        %294 = vmatpush1.msra.mxu0 0.0
        %295 = vmatprep.subr.mxu0 0.0
        %296 = vmatpush1.msra.mxu0 0.0
        %297 = vmatprep.subr.mxu0 0.0
        %298 = vmatpush1.msra.mxu0 0.0
        %299 = vmatprep.subr.mxu0 0.0
        %300 = vmatpush1.msra.mxu0 0.0
        %301 = vmatprep.subr.mxu0 0.0
        %302 = vmatpush1.msra.mxu0 0.0
        %303 = vmatprep.subr.mxu0 0.0
        %304 = vmatpush1.msra.mxu0 0.0
        %305 = vmatprep.subr.mxu0 0.0
        %306 = vmatpush1.msra.mxu0 0.0
        %307 = vmatprep.subr.mxu0 0.0
        %308 = vmatpush1.msra.mxu0 0.0
        %309 = vmatprep.subr.mxu0 0.0
        %310 = vmatpush1.msra.mxu0 0.0
        %311 = vmatprep.subr.mxu0 0.0
        %312 = vmatpush1.msra.mxu0 0.0
        %313 = vmatprep.subr.mxu0 0.0
        %314 = vmatpush1.msra.mxu0 0.0
        %315 = vmatprep.subr.mxu0 0.0
        %316 = vmatpush1.msra.mxu0 0.0
        %317 = vmatprep.subr.mxu0 0.0
        %318 = vmatpush1.msra.mxu0 0.0
        %319 = vmatprep.subr.mxu0 0.0
        %320 = vmatpush1.msra.mxu0 0.0
        %321 = vmatprep.subr.mxu0 0.0
        %322 = vmatpush1.msra.mxu0 0.0
        %323 = vmatprep.subr.mxu0 0.0
        %324 = vmatpush1.msra.mxu0 0.0
        %325 = vmatprep.subr.mxu0 0.0
        %326 = vmatpush1.msra.mxu0 0.0
        %327 = vmatprep.subr.mxu0 0.0
        %328 = vmatpush1.msra.mxu0 0.0
        %329 = vmatprep.mubr.f32.mxu0 0.0
        %330 = vmatmul.mubr.f32.gmra.mrb[0].mxu0 %v263
        %v331 = vpop.f32.mrb[0].mxu0
        %v332 = vadd.f32 0.0, %v331
        %v333 = vpop.f32.mrb[0].mxu0
        %334 = vdwg.mxu0
        %v335 = vld [vmem:[%s2] sm:$0xff]
        %337 = vset.pattern.permute.xlu0 0
        %338 = vperm.xlu0 %337, %v335
        %v339 = vpop.permute.xlu0 %338
        %v341 = vmul.f32 %v332, %v339
        %v342 = vld [vmem:[%s255] sm:$0x1]
        %v344 = vlaneseq
        %v345 = vshrl.u32 %v344, 7
        %v346 = vsub.s32 0, %v345
        %v347 = vrot.slane %v342, %v346
        %v349 = vmul.f32 %v341, %v347
        %v350 = vmul.f32 %v349, %v349
        %v351 = vsub.f32 1.0, %v350
        %v352 = vmax.f32 %v351, 0.0
        %v353 = vmin.f32 %v352, 1.0
        %v354 = vrsqrt.pop %v353
        %v355 = vmul.f32 %v353, %v354
        %vm356 = vcmp.eq.f32.partialorder %v353, inf
        %v357 = vsel %vm356, %v353, %v355
        %vm358 = vcmp.eq.f32.partialorder %v353, 0.0
        %v359 = vand.u32 %v353, 2147483648
        %v360 = vsel %vm358, %v359, %v357
        %v361 = vmul.f32 %v349, 0.87758255
        %v362 = vmul.f32 %v360, 0.47942555
        %v363 = vsub.f32 %v361, %v362
        %vm364 = vcmp.gt.f32.partialorder %v349, -0.87758255
        %v365 = vsub.f32 %v349, 0.23971277
        %v366 = vsel %vm364, %v363, %v365
        %v367 = vld [vmem:[%s4] sm:$0xff]
        %s368 = smul.u32 %s22, 128
        %v369 = vstv %s368
        %v370 = vsub.s32 %v367, %v369
        %v371 = vlaneseq
        %v372 = vand.u32 %v371, 127
        %373 = vset.pattern.permute.xlu0 0
        %374 = vperm.xlu0 %373, %v370
        %v375 = vpop.permute.xlu0 %374
        %vm376 = vcmp.eq.s32.totalorder %v372, %v375
        %v377 = vsel %vm376, %v366, %v349
        %v378 = vmul.f32 %v377, 30.0
        %379 = vst [vmem:[%s252] sm:$0xff] %v378
        %s380 = sand.u32 %s145, 1
        %s381 = scalar_lea.sflag [#allocation4], %s380
        %s382 = sand.u32 %s145, 1
        %s383 = smul.addr %s382, 8
        %s384 = scalar_lea.vmem [#allocation5], %s383
        // Predicated region
        $region45: #{tpu_custom_call.1} parent=39 // pred_check
          %p385 = pneg %p155
        $region46: #{tpu_custom_call.1} parent=39 // pred_check_branch
          %387 = sbr.rel (%p385) target = $region48
        $region47: #{tpu_custom_call.1} parent=39 // pred_region
          %s389 = ssub.s32 128, 128
          %390 = vsyncadd %s381, %s389
          %s391 = smul.addr %s22, 128
          %s392 = scalar_lea.hbm %s5, %s391
          %s394 = sshll.u32 %s384, 4
          %s395 = int_to_ptr.vmem [resolvable:$true] %s394
          %397 = dma.vmem_to_hbm [thread:$0]  %s395, 128, %s392, %s381
        $region48: #{tpu_custom_call.1} parent=39 // pred_fallthru
          _
      $region40: #{tpu_custom_call.1} parent=5 // pred_fallthru
        _
      %p398 = scmp.le.s32.totalorder 2, %s17
      // Predicated region
      $region49: #{tpu_custom_call.1} parent=5 // pred_check
        %p399 = pneg %p398
      $region50: #{tpu_custom_call.1} parent=5 // pred_check_branch
        %401 = sbr.rel (%p399) target = $region52
      $region51: #{tpu_custom_call.1} parent=5 // pred_region
        %s402 = ssub.s32 %s17, 2
        // Predicated region
        $region53: #{tpu_custom_call.1} parent=51 // pred_check
          %p403 = pneg %p161
        $region54: #{tpu_custom_call.1} parent=51 // pred_check_branch
          %405 = sbr.rel (%p403) target = $region56
        $region55: #{tpu_custom_call.1} parent=51 // pred_region
          %s406 = sand.u32 %s146, 1
          %s407 = scalar_lea.sflag [#allocation4], %s406
          %s408 = sand.u32 %s146, 1
          %s409 = smul.addr %s408, 8
          %s410 = scalar_lea.vmem [#allocation5], %s409
          %411 = dma.done %s407, 128
        $region56: #{tpu_custom_call.1} parent=51 // pred_fallthru
          _
      $region52: #{tpu_custom_call.1} parent=5 // pred_fallthru
        _
    $region6: #{tpu_custom_call.1} parent=1 // loop_footer
      %s21 = sadd.s32 1, %s17
    $region7: #{tpu_custom_call.1} parent=1 // loop_footer_branch
      %16 = sbr.rel target = $region3
    $region8: #{tpu_custom_call.1} parent=1 // loop_exit
      _
    %412 = vsyncpa [#allocation3], 1
    %s413 = scalar_lea.sflag [#allocation3], 1
    %414 = vsyncpa %s413, 1
    %415 = vsyncpa [#allocation4], 1
    %s416 = scalar_lea.sflag [#allocation4], 1
    %417 = vsyncpa %s416, 1

</llo_original>
